<compile_context>
chip_gen: v7x
topology: tpu7x:2x2x1
jax: 0.10.0
libtpu: 0.0.40
codegen_flags: <defaults>
</compile_context>

<pallas_src>
import functools

import jax
import jax.numpy as jnp
from jax.experimental import pallas as pl
from jax.experimental.pallas import tpu as pltpu


def _ngram_kernel(a_ref, tgt_ref, wf_ref, bf_ref, logits_ref, nll_ref, *, T, V):
    # a_ref:      (RB, KE_pad)   bf16 tanh'd shifted embedding slab
    # tgt_ref:    (RB, 1)        int32 next-token targets (last pos of each seq unused)
    # wf_ref:     (KE_pad, V_pad) bf16 fused conv+classifier weight (zero-padded)
    # bf_ref:     (1, V_pad)     f32 fused bias (zero-padded)
    # logits_ref: (RB, V_pad)    bf16 lane-dense padded logits
    # nll_ref:    (1, 1, 1)      f32 per-block summed cross entropy
    RB = a_ref.shape[0]
    V_pad = wf_ref.shape[1]

    # One MXU matmul (bf16 inputs, f32 accumulation), f32 bias add.
    logits = jnp.dot(a_ref[...], wf_ref[...],
                     preferred_element_type=jnp.float32) + bf_ref[...]
    logits_ref[...] = logits.astype(logits_ref.dtype)                 # full 128-lane store

    # masked log-softmax over the real vocabulary lanes only (f32 throughout)
    col = jax.lax.broadcasted_iota(jnp.int32, (RB, V_pad), 1)
    lane_valid = col < V
    lr = jnp.where(lane_valid, logits, jnp.float32(-1e30))
    m = jnp.max(lr, axis=-1, keepdims=True)
    lse = m + jnp.log(jnp.sum(jnp.exp(lr - m), axis=-1, keepdims=True))
    onehot = (col == tgt_ref[...])                                    # (RB, V_pad) bool
    picked = jnp.sum(jnp.where(onehot, lr, 0.0), axis=-1, keepdims=True)

    # rows are (seq, t) flattened seq-major; last position of each seq has no target
    row = jax.lax.broadcasted_iota(jnp.int32, (RB, 1), 0)
    row_valid = (row % T) != (T - 1)
    nll = jnp.where(row_valid, lse - picked, 0.0)                     # (RB, 1)
    nll_ref[0] = jnp.sum(nll, axis=0, keepdims=True)                  # (1, 1)


def _round_up(x, m):
    return (x + m - 1) // m * m


def _pick_batch_block(N, T, row_cap=4096):
    """Sequences per grid block.

    Preference order: (1) rows-per-block fits under row_cap (large DMAs, close
    to HBM roofline, still well under v7x's 64 MiB VMEM at bf16), (2) an even
    number of grid blocks >= 2 (balanced v7x megacore split / pipelining on
    v5e-v6e), (3) the largest row block that fits (smallest otherwise).
    """
    best = None
    for nb in range(1, N + 1):
        if N % nb:
            continue
        rb = nb * T
        if rb % 8 and nb != N:       # sublane-aligned rows unless block == full array
            continue
        g = N // nb
        tier = 2 if (g >= 2 and g % 2 == 0) else (1 if g >= 2 else 0)
        fits = rb <= row_cap
        score = (fits, tier, rb if fits else -rb)
        if best is None or score > best[0]:
            best = (score, nb)
    return best[1]


def neural_ngram_forward(x, emb_table, wconv, bconv, wcls, bcls):
    """x: (N, T) int token ids. Returns (logits (N, T, V) f32, loss scalar)."""
    N, T = x.shape
    V, E = emb_table.shape
    H, E2, K = wconv.shape                     # PyTorch Conv1d weight (H, E, K)
    assert E2 == E
    assert wcls.shape == (V, H), "classifier requires conv_dim == emb_dim"

    KE = K * E
    KE_pad = _round_up(KE, 128)
    V_pad = _round_up(V, 128)
    NB = _pick_batch_block(N, T)
    G = N // NB
    RB = NB * T
    rows = N * T

    # ---- wrapper glue: embedding gather + tanh + shifted slab + fused weights ----
    emb = jnp.take(emb_table, x, axis=0).astype(jnp.float32)          # (N, T, E)
    act = jnp.tanh(emb)                                               # tanh BEFORE K-way dup
    act_pad = jnp.pad(act, ((0, 0), (K - 1, 0), (0, 0)))              # causal left pad (zeros)
    slab = jnp.concatenate([act_pad[:, k:k + T, :] for k in range(K)], axis=-1)
    slab = slab.reshape(rows, KE)
    slab = jnp.pad(slab, ((0, 0), (0, KE_pad - KE)))                  # lane-dense input
    slab = slab.astype(jnp.bfloat16)                                  # halve HBM read

    wconv_t = jnp.transpose(wconv, (2, 1, 0)).astype(jnp.float32)     # (K, E, H)
    wcls_t = wcls.T.astype(jnp.float32)                               # (H, V)
    wf = jnp.einsum('keh,hv->kev', wconv_t, wcls_t).reshape(KE, V)    # fused conv+classifier
    wf = jnp.pad(wf, ((0, KE_pad - KE), (0, V_pad - V))).astype(jnp.bfloat16)
    bf = (bconv.astype(jnp.float32) @ wcls_t + bcls.astype(jnp.float32))[None, :]
    bf = jnp.pad(bf, ((0, 0), (0, V_pad - V)))                        # keep bias f32

    tgt = jnp.concatenate([x[:, 1:], jnp.zeros((N, 1), x.dtype)], axis=1)
    tgt = tgt.reshape(rows, 1).astype(jnp.int32)

    cost = pl.CostEstimate(
        flops=2 * rows * KE_pad * V_pad,
        transcendentals=rows * V_pad,
        bytes_accessed=(2 * slab.size + 4 * tgt.size + 2 * wf.size + 4 * bf.size
                        + 2 * rows * V_pad + 4 * G))

    kernel = functools.partial(_ngram_kernel, T=T, V=V)
    logits_pad, nll_sums = pl.pallas_call(
        kernel,
        out_shape=(jax.ShapeDtypeStruct((rows, V_pad), jnp.bfloat16),
                   jax.ShapeDtypeStruct((G, 1, 1), jnp.float32)),
        grid=(G,),
        in_specs=[
            pl.BlockSpec((RB, KE_pad), lambda n: (n, 0)),
            pl.BlockSpec((RB, 1), lambda n: (n, 0)),
            pl.BlockSpec((KE_pad, V_pad), lambda n: (0, 0)),   # weights stay resident
            pl.BlockSpec((1, V_pad), lambda n: (0, 0)),
        ],
        out_specs=(pl.BlockSpec((RB, V_pad), lambda n: (n, 0)),
                   pl.BlockSpec((1, 1, 1), lambda n: (n, 0, 0))),
        compiler_params=pltpu.CompilerParams(
            dimension_semantics=("parallel",),
            vmem_limit_bytes=48 * 1024 * 1024),
        cost_estimate=cost,
    )(slab, tgt, wf, bf)

    logits = logits_pad[:, :V].astype(jnp.float32).reshape(N, T, V)
    loss = jnp.sum(nll_sums) / (N * (T - 1))
    return logits, loss


def _reference_forward(x, emb_table, wconv, bconv, wcls, bcls):
    """Pure-JAX reference mirroring the PyTorch forward, for verification."""
    N, T = x.shape
    H, E, K = wconv.shape
    emb = jnp.take(emb_table, x, axis=0)                              # (N, T, E)
    a = jnp.tanh(emb)
    a_pad = jnp.pad(a, ((0, 0), (K - 1, 0), (0, 0)))                  # left-pad time
    wconv_t = jnp.transpose(wconv, (2, 1, 0))                         # (K, E, H)
    y = jnp.broadcast_to(bconv[None, None, :], (N, T, H)).astype(jnp.float32)
    for k in range(K):
        y = y + jnp.einsum('nte,eh->nth', a_pad[:, k:k + T, :], wconv_t[k])
    logits = jnp.einsum('nth,vh->ntv', y, wcls) + bcls[None, None, :]
    lr = logits[:, :-1, :]
    lse = jax.nn.logsumexp(lr, axis=-1)
    picked = jnp.take_along_axis(lr, x[:, 1:, None], axis=-1)[..., 0]
    loss = jnp.mean(lse - picked)
    return logits, loss


if __name__ == "__main__":
    # module config: num_classes=16, emb_dim=32, conv_dim=32 (must equal emb_dim
    # for the PyTorch module's classifier to apply), kernel_size=3
    num_classes, emb_dim, conv_dim, ksize = 16, 32, 32, 3
    N, T = 2, 8

    key = jax.random.PRNGKey(0)
    k_emb, k_wc, k_bc, k_wl, k_bl, k_x = jax.random.split(key, 6)
    emb_table = jax.random.normal(k_emb, (num_classes, emb_dim), jnp.float32)
    wconv = jax.random.normal(k_wc, (conv_dim, emb_dim, ksize), jnp.float32) * 0.1
    bconv = jax.random.normal(k_bc, (conv_dim,), jnp.float32) * 0.1
    wcls = jax.random.normal(k_wl, (num_classes, emb_dim), jnp.float32) * 0.1
    bcls = jax.random.normal(k_bl, (num_classes,), jnp.float32) * 0.1
    x = jax.random.randint(k_x, (N, T), 0, num_classes, jnp.int32)

    logits, loss = neural_ngram_forward(x, emb_table, wconv, bconv, wcls, bcls)
    jax.block_until_ready((logits, loss))

    ref_logits, ref_loss = _reference_forward(x, emb_table, wconv, bconv, wcls, bcls)
    # Tolerances loosened for the bf16 slab/weights/logits path; loss is still
    # accumulated in f32 inside the kernel.
    assert jnp.allclose(logits, ref_logits, atol=2e-2, rtol=2e-2)
    assert jnp.allclose(loss, ref_loss, atol=1e-2, rtol=1e-2)

    print("KERNEL_OK")
</pallas_src>

<mosaic_0001>
module attributes {stable_mosaic.version = 11 : i64} {
  func.func @_ngram_kernel(%arg0: i32, %arg1: memref<8x128xbf16, #tpu.memory_space<vmem>>, %arg2: memref<8x1xi32, #tpu.memory_space<vmem>>, %arg3: memref<128x128xbf16, #tpu.memory_space<vmem>>, %arg4: memref<1x128xf32, #tpu.memory_space<vmem>>, %arg5: memref<8x128xbf16, #tpu.memory_space<vmem>>, %arg6: memref<1x1x1xf32, #tpu.memory_space<vmem>>) attributes {dimension_semantics = [#tpu.dimension_semantics<parallel>], iteration_bounds = array<i64: 2>, scalar_prefetch = 0 : i64, scratch_operands = 0 : i64, tpu.core_type = #tpu.core_type<tc>, window_params = [{transform_indices = @transform_0, window_bounds = array<i64: 8, 128>}, {transform_indices = @transform_1, window_bounds = array<i64: 8, 1>}, {pipeline_mode = #tpu.pipeline_mode<synchronous>, transform_indices = @transform_2, window_bounds = array<i64: 128, 128>}, {pipeline_mode = #tpu.pipeline_mode<synchronous>, transform_indices = @transform_3, window_bounds = array<i64: 1, 128>}, {transform_indices = @transform_4, window_bounds = array<i64: 8, 128>}, {transform_indices = @transform_5, window_bounds = array<i64: 1, 1, 1>}]} {
    %c0 = arith.constant 0 : index
    %c0_0 = arith.constant 0 : index
    %0 = vector.load %arg1[%c0, %c0_0] : memref<8x128xbf16, #tpu.memory_space<vmem>>, vector<8x128xbf16>
    %c0_1 = arith.constant 0 : index
    %c0_2 = arith.constant 0 : index
    %1 = vector.load %arg3[%c0_1, %c0_2] : memref<128x128xbf16, #tpu.memory_space<vmem>>, vector<128x128xbf16>
    %cst = arith.constant dense<0.000000e+00> : vector<8x128xf32>
    %2 = tpu.matmul %0, %1, %cst {dimension_numbers = #tpu.dot_dimension_numbers<[1], [0], [0], [1], [0, 0, 1, 1], [], []>} : vector<8x128xbf16>, vector<128x128xbf16>, vector<8x128xf32> -> vector<8x128xf32>
    %c0_3 = arith.constant 0 : index
    %c0_4 = arith.constant 0 : index
    %3 = vector.load %arg4[%c0_3, %c0_4] : memref<1x128xf32, #tpu.memory_space<vmem>>, vector<1x128xf32>
    %4 = vector.broadcast %3 : vector<1x128xf32> to vector<8x128xf32>
    %5 = arith.addf %2, %4 : vector<8x128xf32>
    %6 = arith.truncf %5 : vector<8x128xf32> to vector<8x128xbf16>
    %c0_5 = arith.constant 0 : index
    %c0_6 = arith.constant 0 : index
    %7 = vector.load %arg5[%c0_5, %c0_6] : memref<8x128xbf16, #tpu.memory_space<vmem>>, vector<8x128xbf16>
    tpu.vector_store %arg5[%c0_5, %c0_6], %6 {strides = array<i32>} : memref<8x128xbf16, #tpu.memory_space<vmem>>, vector<8x128xbf16>,
    %8 = tpu.iota {dimensions = array<i32: 1>} : vector<8x128xi32>
    %c16_i32 = arith.constant 16 : i32
    %9 = vector.broadcast %c16_i32 : i32 to vector<8x128xi32>
    %10 = arith.cmpi slt, %8, %9 : vector<8x128xi32>
    %cst_7 = arith.constant -1.000000e+30 : f32
    %11 = vector.broadcast %cst_7 : f32 to vector<8x128xf32>
    %12 = arith.select %10, %5, %11 : vector<8x128xi1>, vector<8x128xf32>
    %cst_8 = arith.constant dense<0xFF800000> : vector<8xf32>
    %13 = vector.multi_reduction <maximumf>, %12, %cst_8 [1] : vector<8x128xf32> to vector<8xf32>
    %14 = vector.shape_cast %13 : vector<8xf32> to vector<8x1xf32>
    %15 = vector.broadcast %14 : vector<8x1xf32> to vector<8x128xf32>
    %16 = arith.subf %12, %15 : vector<8x128xf32>
    %17 = math.exp %16 : vector<8x128xf32>
    %cst_9 = arith.constant dense<0.000000e+00> : vector<8xf32>
    %18 = vector.multi_reduction <add>, %17, %cst_9 [1] : vector<8x128xf32> to vector<8xf32>
    %19 = vector.shape_cast %18 : vector<8xf32> to vector<8x1xf32>
    %20 = math.log %19 : vector<8x1xf32>
    %21 = arith.addf %14, %20 : vector<8x1xf32>
    %c0_10 = arith.constant 0 : index
    %c0_11 = arith.constant 0 : index
    %22 = vector.load %arg2[%c0_10, %c0_11] : memref<8x1xi32, #tpu.memory_space<vmem>>, vector<8x1xi32>
    %23 = vector.broadcast %22 : vector<8x1xi32> to vector<8x128xi32>
    %24 = arith.cmpi eq, %8, %23 : vector<8x128xi32>
    %cst_12 = arith.constant 0.000000e+00 : f32
    %25 = vector.broadcast %cst_12 : f32 to vector<8x128xf32>
    %26 = arith.select %24, %12, %25 : vector<8x128xi1>, vector<8x128xf32>
    %cst_13 = arith.constant dense<0.000000e+00> : vector<8xf32>
    %27 = vector.multi_reduction <add>, %26, %cst_13 [1] : vector<8x128xf32> to vector<8xf32>
    %28 = vector.shape_cast %27 : vector<8xf32> to vector<8x1xf32>
    %29 = tpu.iota {dimensions = array<i32: 0>} : vector<8x1xi32>
    %c8_i32 = arith.constant 8 : i32
    %c0_i32 = arith.constant 0 : i32
    %30 = arith.cmpi eq, %c8_i32, %c0_i32 : i32
    %c1_i32 = arith.constant 1 : i32
    %31 = arith.select %30, %c1_i32, %c8_i32 : i32
    %32 = vector.broadcast %31 : i32 to vector<8x1xi32>
    %33 = arith.remsi %29, %32 : vector<8x1xi32>
    %c0_i32_14 = arith.constant 0 : i32
    %34 = vector.broadcast %c0_i32_14 : i32 to vector<8x1xi32>
    %35 = arith.cmpi ne, %33, %34 : vector<8x1xi32>
    %c0_i32_15 = arith.constant 0 : i32
    %36 = vector.broadcast %c0_i32_15 : i32 to vector<8x1xi32>
    %37 = arith.cmpi slt, %33, %36 : vector<8x1xi32>
    %c0_i32_16 = arith.constant 0 : i32
    %38 = arith.cmpi slt, %31, %c0_i32_16 : i32
    %39 = vector.broadcast %38 : i1 to vector<8x1xi1>
    %40 = vector.broadcast %39 : vector<8x1xi1> to vector<8x1xi1>
    %41 = arith.xori %37, %40 : vector<8x1xi1>
    %42 = arith.andi %41, %35 : vector<8x1xi1>
    %43 = vector.broadcast %31 : i32 to vector<8x1xi32>
    %44 = arith.addi %33, %43 : vector<8x1xi32>
    %45 = arith.select %42, %44, %33 : vector<8x1xi1>, vector<8x1xi32>
    %c7_i32 = arith.constant 7 : i32
    %46 = vector.broadcast %c7_i32 : i32 to vector<8x1xi32>
    %47 = arith.cmpi ne, %45, %46 : vector<8x1xi32>
    %48 = arith.subf %21, %28 : vector<8x1xf32>
    %cst_17 = arith.constant 0.000000e+00 : f32
    %49 = vector.broadcast %cst_17 : f32 to vector<8x1xf32>
    %50 = arith.select %47, %48, %49 : vector<8x1xi1>, vector<8x1xf32>
    %cst_18 = arith.constant dense<0.000000e+00> : vector<1xf32>
    %51 = vector.multi_reduction <add>, %50, %cst_18 [0] : vector<8x1xf32> to vector<1xf32>
    %52 = vector.shape_cast %51 : vector<1xf32> to vector<1x1xf32>
    %c0_19 = arith.constant 0 : index
    %c0_20 = arith.constant 0 : index
    %c0_21 = arith.constant 0 : index
    %53 = vector.load %arg6[%c0_19, %c0_20, %c0_21] : memref<1x1x1xf32, #tpu.memory_space<vmem>>, vector<1x1x1xf32>
    %54 = vector.shape_cast %53 : vector<1x1x1xf32> to vector<1x1xf32>
    %55 = vector.shape_cast %52 : vector<1x1xf32> to vector<1x1x1xf32>
    tpu.vector_store %arg6[%c0_19, %c0_20, %c0_21], %55 {strides = array<i32>} : memref<1x1x1xf32, #tpu.memory_space<vmem>>, vector<1x1x1xf32>,
    return
  }
  func.func @transform_0(%arg0: i32) -> (i32, i32) {
    %c0_i32 = arith.constant 0 : i32
    %c0_i32_0 = arith.constant 0 : i32
    return %arg0, %c0_i32 : i32, i32
  }
  func.func @transform_1(%arg0: i32) -> (i32, i32) {
    %c0_i32 = arith.constant 0 : i32
    %c0_i32_0 = arith.constant 0 : i32
    return %arg0, %c0_i32 : i32, i32
  }
  func.func @transform_2(%arg0: i32) -> (i32, i32) {
    %c0_i32 = arith.constant 0 : i32
    %c0_i32_0 = arith.constant 0 : i32
    %c0_i32_1 = arith.constant 0 : i32
    return %c0_i32, %c0_i32_0 : i32, i32
  }
  func.func @transform_3(%arg0: i32) -> (i32, i32) {
    %c0_i32 = arith.constant 0 : i32
    %c0_i32_0 = arith.constant 0 : i32
    %c0_i32_1 = arith.constant 0 : i32
    return %c0_i32, %c0_i32_0 : i32, i32
  }
  func.func @transform_4(%arg0: i32) -> (i32, i32) {
    %c0_i32 = arith.constant 0 : i32
    %c0_i32_0 = arith.constant 0 : i32
    return %arg0, %c0_i32 : i32, i32
  }
  func.func @transform_5(%arg0: i32) -> (i32, i32, i32) {
    %c0_i32 = arith.constant 0 : i32
    %c0_i32_0 = arith.constant 0 : i32
    %c0_i32_1 = arith.constant 0 : i32
    return %arg0, %c0_i32, %c0_i32_0 : i32, i32, i32
  }
}

</mosaic_0001>

<llo_original>
// kernel: tpu_custom_call.1
$region0: #{tpu_custom_call.1}
  #allocation0 [shape = 'u32[]', space=smem, size = 0x4, offset = 0x4, fixed_abs, tag = 'smem constant byte address 0x4 - core index']
  #allocation1 [shape = 'u32[144,128]{1,0:T(1,128)}', space=vmem, size = 0x12000, scoped, tag = 'internal scratch']
  %s0 = inlined_call_operand.vmem [shape: bf16[16,128], index: 0, kind: input, shape index: {}]
  %s1 = inlined_call_operand.vmem [shape: s32[16,1], index: 1, kind: input, shape index: {}]
  %s2 = inlined_call_operand.hbm [shape: bf16[128,128], index: 2, kind: input, shape index: {}]
  %s3 = inlined_call_operand.vmem [shape: f32[1,128], index: 3, kind: input, shape index: {}]
  %s4 = inlined_call_operand.hbm [shape: bf16[16,128], index: 4, kind: output, shape index: {0}]
  %s5 = inlined_call_operand.vmem [shape: f32[2,1,1], index: 5, kind: output, shape index: {1}]
  %6 = xla_tuple %s4, %s5
  %s7 = sld [smem:[#allocation0]]
  $region61: #{tpu_custom_call.1} parent=0
    _
  %s9 = ssub.s32 1, %s7
  %s10 = scalar_select 0, %s9, %s7
  $region1: #{tpu_custom_call.1} parent=0
    #allocation2 [shape = 'u8[32768]{0}', space=vmem, size = 0x8000, scoped, tag = 'input window, operand 2, single buffered']
    #allocation3 [shape = 's32[2]{0}', space=sflag, size = 0x8, scoped, tag = 'scoped memory for tpu_custom_call.1']
    #allocation4 [shape = 's32[2]{0}', space=sflag, size = 0x8, scoped, tag = 'scoped memory for tpu_custom_call.1']
    #allocation5 [shape = 'u8[4096]{0}', space=vmem, size = 0x1000, scoped, tag = 'output window, operand 0']
    %11 = vsyncpa [#allocation3], 0
    %12 = vsyncpa [#allocation4], 0
    %s13 = scalar_lea.sflag [#allocation4], 1
    %14 = vsyncpa %s13, 0
    loop: start=0, step=1, limit=4
    $region2: #{tpu_custom_call.1} parent=1 // loop_pre_header
      _
    $region3: #{tpu_custom_call.1} parent=1 // loop_header
      %s16 = sphi 0, %s20
      %p17 = scmp.ge.s32.totalorder %s16, 4
      %s26 = sphi 0, %s28
      %s29 = sphi 0, %s26
      %s30 = sphi 0, %s29
      %s46 = sphi 0, %s30
      %s52 = sphi 0, %s54
      %s55 = sphi 0, %s52
      %s56 = sphi 0, %s55
      %s72 = sphi 0, %s56
      %s76 = sphi 0, %s76
      %s78 = sphi 0, %s76
      %s79 = sphi 0, %s78
      %s93 = sphi 0, %s79
      %s97 = sphi 0, %s97
      %s99 = sphi 0, %s97
      %s100 = sphi 0, %s99
      %s114 = sphi 0, %s100
      %s120 = sphi 0, %s122
      %s123 = sphi 0, %s120
      %s124 = sphi 0, %s123
      %s140 = sphi 0, %s124
      %s146 = sphi 0, %s148
      %s149 = sphi 0, %s146
      %s150 = sphi 0, %s149
      %s166 = sphi 0, %s150
    $region4: #{tpu_custom_call.1} parent=1 // loop_header_branch
      %19 = sbr.rel (%p17) target = $region8
    $region5: #{tpu_custom_call.1} parent=1 // loop_body
      %s21 = ssub.s32 %s16, 1
      %s22 = ssub.s32 %s16, 2
      %s23 = sadd.s32 %s16, 1
      %s24 = ssub.s32 %s16, %s23
      %p25 = scmp.eq.s32.totalorder %s24, 0
      %s27 = sadd.s32 %s26, 1
      %s28 = scalar_select %p25, %s26, %s27
      %p31 = pneg %p25
      %p32 = scmp.eq.s32.totalorder %s16, 1
      %p33 = por %p31, %p32
      %p34 = scmp.ne.s32.totalorder %s26, %s29
      %p35 = scmp.eq.s32.totalorder %s16, 0
      %p36 = por %p34, %p35
      %p37 = scmp.ne.s32.totalorder %s26, %s29
      %p38 = scmp.eq.s32.totalorder %s21, 1
      %p39 = por %p37, %p38
      %p40 = scmp.ne.s32.totalorder %s29, %s30
      %p41 = scmp.eq.s32.totalorder %s21, 0
      %p42 = por %p40, %p41
      %p43 = scmp.ne.s32.totalorder %s29, %s30
      %p44 = scmp.eq.s32.totalorder %s22, 1
      %p45 = por %p43, %p44
      %p47 = scmp.ne.s32.totalorder %s30, %s46
      %p48 = scmp.eq.s32.totalorder %s22, 0
      %p49 = por %p47, %p48
      %s50 = ssub.s32 %s16, %s23
      %p51 = scmp.eq.s32.totalorder %s50, 0
      %s53 = sadd.s32 %s52, 1
      %s54 = scalar_select %p51, %s52, %s53
      %p57 = pneg %p51
      %p58 = scmp.eq.s32.totalorder %s16, 1
      %p59 = por %p57, %p58
      %p60 = scmp.ne.s32.totalorder %s52, %s55
      %p61 = scmp.eq.s32.totalorder %s16, 0
      %p62 = por %p60, %p61
      %p63 = scmp.ne.s32.totalorder %s52, %s55
      %p64 = scmp.eq.s32.totalorder %s21, 1
      %p65 = por %p63, %p64
      %p66 = scmp.ne.s32.totalorder %s55, %s56
      %p67 = scmp.eq.s32.totalorder %s21, 0
      %p68 = por %p66, %p67
      %p69 = scmp.ne.s32.totalorder %s55, %s56
      %p70 = scmp.eq.s32.totalorder %s22, 1
      %p71 = por %p69, %p70
      %p73 = scmp.ne.s32.totalorder %s56, %s72
      %p74 = scmp.eq.s32.totalorder %s22, 0
      %p75 = por %p73, %p74
      %s77 = sadd.s32 %s76, 1
      %p80 = scmp.eq.s32.totalorder %s16, 1
      %p81 = scmp.ne.s32.totalorder %s76, %s78
      %p82 = scmp.eq.s32.totalorder %s16, 0
      %p83 = por %p81, %p82
      %p84 = scmp.ne.s32.totalorder %s76, %s78
      %p85 = scmp.eq.s32.totalorder %s21, 1
      %p86 = por %p84, %p85
      %p87 = scmp.ne.s32.totalorder %s78, %s79
      %p88 = scmp.eq.s32.totalorder %s21, 0
      %p89 = por %p87, %p88
      %p90 = scmp.ne.s32.totalorder %s78, %s79
      %p91 = scmp.eq.s32.totalorder %s22, 1
      %p92 = por %p90, %p91
      %p94 = scmp.ne.s32.totalorder %s79, %s93
      %p95 = scmp.eq.s32.totalorder %s22, 0
      %p96 = por %p94, %p95
      %s98 = sadd.s32 %s97, 1
      %p101 = scmp.eq.s32.totalorder %s16, 1
      %p102 = scmp.ne.s32.totalorder %s97, %s99
      %p103 = scmp.eq.s32.totalorder %s16, 0
      %p104 = por %p102, %p103
      %p105 = scmp.ne.s32.totalorder %s97, %s99
      %p106 = scmp.eq.s32.totalorder %s21, 1
      %p107 = por %p105, %p106
      %p108 = scmp.ne.s32.totalorder %s99, %s100
      %p109 = scmp.eq.s32.totalorder %s21, 0
      %p110 = por %p108, %p109
      %p111 = scmp.ne.s32.totalorder %s99, %s100
      %p112 = scmp.eq.s32.totalorder %s22, 1
      %p113 = por %p111, %p112
      %p115 = scmp.ne.s32.totalorder %s100, %s114
      %p116 = scmp.eq.s32.totalorder %s22, 0
      %p117 = por %p115, %p116
      %s118 = ssub.s32 %s16, %s23
      %p119 = scmp.eq.s32.totalorder %s118, 0
      %s121 = sadd.s32 %s120, 1
      %s122 = scalar_select %p119, %s120, %s121
      %p125 = pneg %p119
      %p126 = scmp.eq.s32.totalorder %s16, 1
      %p127 = por %p125, %p126
      %p128 = scmp.ne.s32.totalorder %s120, %s123
      %p129 = scmp.eq.s32.totalorder %s16, 0
      %p130 = por %p128, %p129
      %p131 = scmp.ne.s32.totalorder %s120, %s123
      %p132 = scmp.eq.s32.totalorder %s21, 1
      %p133 = por %p131, %p132
      %p134 = scmp.ne.s32.totalorder %s123, %s124
      %p135 = scmp.eq.s32.totalorder %s21, 0
      %p136 = por %p134, %p135
      %p137 = scmp.ne.s32.totalorder %s123, %s124
      %p138 = scmp.eq.s32.totalorder %s22, 1
      %p139 = por %p137, %p138
      %p141 = scmp.ne.s32.totalorder %s124, %s140
      %p142 = scmp.eq.s32.totalorder %s22, 0
      %p143 = por %p141, %p142
      %s144 = ssub.s32 %s16, %s23
      %p145 = scmp.eq.s32.totalorder %s144, 0
      %s147 = sadd.s32 %s146, 1
      %s148 = scalar_select %p145, %s146, %s147
      %p151 = pneg %p145
      %p152 = scmp.eq.s32.totalorder %s16, 1
      %p153 = por %p151, %p152
      %p154 = scmp.ne.s32.totalorder %s146, %s149
      %p155 = scmp.eq.s32.totalorder %s16, 0
      %p156 = por %p154, %p155
      %p157 = scmp.ne.s32.totalorder %s146, %s149
      %p158 = scmp.eq.s32.totalorder %s21, 1
      %p159 = por %p157, %p158
      %p160 = scmp.ne.s32.totalorder %s149, %s150
      %p161 = scmp.eq.s32.totalorder %s21, 0
      %p162 = por %p160, %p161
      %p163 = scmp.ne.s32.totalorder %s149, %s150
      %p164 = scmp.eq.s32.totalorder %s22, 1
      %p165 = por %p163, %p164
      %p167 = scmp.ne.s32.totalorder %s150, %s166
      %p168 = scmp.eq.s32.totalorder %s22, 0
      %p169 = por %p167, %p168
      %p170 = scmp.le.s32.totalorder 1, %s16
      %p171 = scmp.lt.s32.totalorder %s16, 3
      %p172 = pnand %p170, %p171
      %p173 = pneg %p172
      // Predicated region
      $region9: #{tpu_custom_call.1} parent=5 // pred_check
        _
      $region10: #{tpu_custom_call.1} parent=5 // pred_check_branch
        %175 = sbr.rel (%p172) target = $region12
      $region11: #{tpu_custom_call.1} parent=5 // pred_region
        %s176 = ssub.s32 %s16, 1
        // Predicated region
        $region13: #{tpu_custom_call.1} parent=11 // pred_check
          %p177 = pneg %p89
        $region14: #{tpu_custom_call.1} parent=11 // pred_check_branch
          %179 = sbr.rel (%p177) target = $region16
        $region15: #{tpu_custom_call.1} parent=11 // pred_region
          %s181 = ssub.s32 1024, 1024
          %182 = vsyncadd [#allocation3], %s181
          %s183 = sshll.u32 [#allocation2], 4
          %s184 = int_to_ptr.vmem [resolvable:$true] %s183
          %189 = dma.hbm_to_vmem [thread:$0]  %s2, 1024, %s184, [#allocation3], 64, 64, 4
        $region16: #{tpu_custom_call.1} parent=11 // pred_fallthru
          _
        // Predicated region
        $region17: #{tpu_custom_call.1} parent=11 // pred_check
          %p190 = pneg %p110
        $region18: #{tpu_custom_call.1} parent=11 // pred_check_branch
          %192 = sbr.rel (%p190) target = $region20
        $region19: #{tpu_custom_call.1} parent=11 // pred_region
          _
        $region20: #{tpu_custom_call.1} parent=11 // pred_fallthru
          _
      $region12: #{tpu_custom_call.1} parent=5 // pred_fallthru
        _
      %p193 = scmp.lt.s32.totalorder %s16, 2
      // Predicated region
      $region21: #{tpu_custom_call.1} parent=5 // pred_check
        %p194 = pneg %p193
      $region22: #{tpu_custom_call.1} parent=5 // pred_check_branch
        %196 = sbr.rel (%p194) target = $region24
      $region23: #{tpu_custom_call.1} parent=5 // pred_region
        // Predicated region
        $region25: #{tpu_custom_call.1} parent=23 // pred_check
          %p197 = pneg %p36
        $region26: #{tpu_custom_call.1} parent=23 // pred_check_branch
          %199 = sbr.rel (%p197) target = $region28
        $region27: #{tpu_custom_call.1} parent=23 // pred_region
          %p200 = scmp.lt.s32.totalorder %s16, 1
          %s201 = scalar_select %p200, %s16, 1
          %s202 = smul.addr %s201, 4
          %s203 = scalar_lea.vmem %s0, %s202
        $region28: #{tpu_custom_call.1} parent=23 // pred_fallthru
          _
        // Predicated region
        $region29: #{tpu_custom_call.1} parent=23 // pred_check
          %p204 = pneg %p62
        $region30: #{tpu_custom_call.1} parent=23 // pred_check_branch
          %206 = sbr.rel (%p204) target = $region32
        $region31: #{tpu_custom_call.1} parent=23 // pred_region
          %p207 = scmp.lt.s32.totalorder %s16, 1
          %s208 = scalar_select %p207, %s16, 1
          %s209 = smul.addr %s208, 8
          %s210 = scalar_lea.vmem %s1, %s209
        $region32: #{tpu_custom_call.1} parent=23 // pred_fallthru
          _
      $region24: #{tpu_custom_call.1} parent=5 // pred_fallthru
        _
      %p211 = scmp.le.s32.totalorder 1, %s16
      %p212 = scmp.lt.s32.totalorder %s16, 3
      %p213 = pnand %p211, %p212
      %p214 = pneg %p213
      // Predicated region
      $region33: #{tpu_custom_call.1} parent=5 // pred_check
        _
      $region34: #{tpu_custom_call.1} parent=5 // pred_check_branch
        %216 = sbr.rel (%p213) target = $region36
      $region35: #{tpu_custom_call.1} parent=5 // pred_region
        %s217 = ssub.s32 %s16, 1
        // Predicated region
        $region37: #{tpu_custom_call.1} parent=35 // pred_check
          %p218 = pneg %p89
        $region38: #{tpu_custom_call.1} parent=35 // pred_check_branch
          %220 = sbr.rel (%p218) target = $region40
        $region39: #{tpu_custom_call.1} parent=35 // pred_region
          %221 = dma.done [#allocation3], 1024
        $region40: #{tpu_custom_call.1} parent=35 // pred_fallthru
          _
        %p222 = scmp.lt.s32.totalorder %s21, 1
        %s223 = scalar_select %p222, %s21, 1
        %s224 = smul.addr %s223, 4
        %s225 = scalar_lea.vmem %s0, %s224
        %p226 = pneg %p42
        %p227 = pneg %p39
        %p228 = scmp.lt.s32.totalorder %s21, 1
        %s229 = scalar_select %p228, %s21, 1
        %s230 = smul.addr %s229, 8
        %s231 = scalar_lea.vmem %s1, %s230
        %p232 = pneg %p68
        %p233 = pneg %p65
        %p234 = pneg %p89
        %p235 = pneg %p86
        %p236 = pneg %p110
        %p237 = pneg %p107
        %p238 = pneg %p136
        %p239 = pneg %p133
        %s240 = sand.u32 %s123, 1
        %s241 = scalar_lea.sflag [#allocation4], %s240
        %s242 = sand.u32 %s123, 1
        %s243 = smul.addr %s242, 4
        %s244 = scalar_lea.vmem [#allocation5], %s243
        %p245 = pneg %p162
        %p246 = pneg %p159
        %p247 = scmp.lt.s32.totalorder %s21, 1
        %s248 = scalar_select %p247, %s21, 1
        %s249 = scalar_lea.vmem %s5, %s248
        %p250 = scmp.lt.s32.totalorder %s21, 1
        %s251 = scalar_select %p250, %s21, 1
        %s252 = smul.addr %s251, 4
        %s253 = scalar_lea.vmem %s0, %s252
        %p254 = scmp.lt.s32.totalorder %s21, 1
        %s255 = scalar_select %p254, %s21, 1
        %s256 = smul.addr %s255, 8
        %s257 = scalar_lea.vmem %s1, %s256
        %p258 = scmp.lt.s32.totalorder %s21, 1
        %s259 = scalar_select %p258, %s21, 1
        %s260 = scalar_lea.vmem %s5, %s259
        %v262 = vld [vmem:[%s253] sm:$0xf]
        %v263 = vld [vmem:[#allocation2] sm:$0xf]
        %v264 = vld [vmem:[#allocation2 + $0x4] sm:$0xf]
        %v265 = vld [vmem:[#allocation2 + $0x8] sm:$0xf]
        %v266 = vld [vmem:[#allocation2 + $0xc] sm:$0xf]
        %v267 = vld [vmem:[#allocation2 + $0x10] sm:$0xf]
        %v268 = vld [vmem:[#allocation2 + $0x14] sm:$0xf]
        %v269 = vld [vmem:[#allocation2 + $0x18] sm:$0xf]
        %v270 = vld [vmem:[#allocation2 + $0x1c] sm:$0xf]
        %v271 = vld [vmem:[#allocation2 + $0x20] sm:$0xf]
        %v272 = vld [vmem:[#allocation2 + $0x24] sm:$0xf]
        %v273 = vld [vmem:[#allocation2 + $0x28] sm:$0xf]
        %v274 = vld [vmem:[#allocation2 + $0x2c] sm:$0xf]
        %v275 = vld [vmem:[#allocation2 + $0x30] sm:$0xf]
        %v276 = vld [vmem:[#allocation2 + $0x34] sm:$0xf]
        %v277 = vld [vmem:[#allocation2 + $0x38] sm:$0xf]
        %v278 = vld [vmem:[#allocation2 + $0x3c] sm:$0xf]
        %v279 = vld [vmem:[%s3] sm:$0x1]
        %v281 = vlaneseq
        %v282 = vshrl.u32 %v281, 7
        %v283 = vsub.s32 0, %v282
        %v284 = vrot.slane %v279, %v283
        %v302 = vunpack.c.l.b16 %v263
        %v303 = vunpack.c.l.b16 %v264
        %v304 = vunpack.c.l.b16 %v265
        %v305 = vunpack.c.l.b16 %v266
        %v306 = vunpack.c.l.b16 %v267
        %v307 = vunpack.c.l.b16 %v268
        %v308 = vunpack.c.l.b16 %v269
        %v309 = vunpack.c.l.b16 %v270
        %v310 = vunpack.c.l.b16 %v271
        %v311 = vunpack.c.l.b16 %v272
        %v312 = vunpack.c.l.b16 %v273
        %v313 = vunpack.c.l.b16 %v274
        %v314 = vunpack.c.l.b16 %v275
        %v315 = vunpack.c.l.b16 %v276
        %v316 = vunpack.c.l.b16 %v277
        %v317 = vunpack.c.l.b16 %v278
        %v318 = vpack.c.b16 %v303, %v302
        %v319 = vpack.c.b16 %v305, %v304
        %v320 = vpack.c.b16 %v307, %v306
        %v321 = vpack.c.b16 %v309, %v308
        %v322 = vpack.c.b16 %v311, %v310
        %v323 = vpack.c.b16 %v313, %v312
        %v324 = vpack.c.b16 %v315, %v314
        %v325 = vpack.c.b16 %v317, %v316
        %334 = vmatprep.subr.bf16.mxu0 0
        %335 = vmatpush1.bf16.msra.mxu0 %v318
        %336 = vmatprep.subr.bf16.mxu0 0
        %337 = vmatpush1.bf16.msra.mxu0 %v319
        %338 = vmatprep.subr.bf16.mxu0 0
        %339 = vmatpush1.bf16.msra.mxu0 %v320
        %340 = vmatprep.subr.bf16.mxu0 0
        %341 = vmatpush1.bf16.msra.mxu0 %v321
        %342 = vmatprep.subr.bf16.mxu0 0
        %343 = vmatpush1.bf16.msra.mxu0 %v322
        %344 = vmatprep.subr.bf16.mxu0 0
        %345 = vmatpush1.bf16.msra.mxu0 %v323
        %346 = vmatprep.subr.bf16.mxu0 0
        %347 = vmatpush1.bf16.msra.mxu0 %v324
        %348 = vmatprep.subr.bf16.mxu0 0
        %349 = vmatpush1.bf16.msra.mxu0 %v325
        %350 = vmatprep.subr.bf16.mxu0 0
        %351 = vmatpush1.bf16.msra.mxu0 0
        %352 = vmatprep.subr.bf16.mxu0 0
        %353 = vmatpush1.bf16.msra.mxu0 0
        %354 = vmatprep.subr.bf16.mxu0 0
        %355 = vmatpush1.bf16.msra.mxu0 0
        %356 = vmatprep.subr.bf16.mxu0 0
        %357 = vmatpush1.bf16.msra.mxu0 0
        %358 = vmatprep.subr.bf16.mxu0 0
        %359 = vmatpush1.bf16.msra.mxu0 0
        %360 = vmatprep.subr.bf16.mxu0 0
        %361 = vmatpush1.bf16.msra.mxu0 0
        %362 = vmatprep.subr.bf16.mxu0 0
        %363 = vmatpush1.bf16.msra.mxu0 0
        %364 = vmatprep.subr.bf16.mxu0 0
        %365 = vmatpush1.bf16.msra.mxu0 0
        %366 = vmatprep.mubr.bf16.mxu0 0
        %367 = vmatmul.mubr.bf16.gmra.mrb[0].mxu0 %v262
        %v368 = vpop.f32.mrb[0].mxu0
        %v369 = vadd.f32 %v284, %v368
        %v370 = vpop.f32.mrb[0].mxu0
        %v371 = vpop.f32.mrb[0].mxu0
        %v372 = vpop.f32.mrb[0].mxu0
        %373 = vdwg.mxu0
        %v374 = vpack.c.bf16 %v369, %v369
        %375 = vst [vmem:[%s244] sm:$0xf] %v374
        %v376 = vlaneseq
        %v377 = vand.u32 %v376, 127
        %vm378 = vcmp.lt.s32.totalorder %v377, 16
        %v379 = vsel %vm378, %v369, -1e+30
        %380 = vmax.xlane.f32.xlu0 %v379
        %v381 = vpop.xlane.xlu0 %380
        %v382 = vsub.f32 %v379, %v381
        %v383 = vmul.f32 %v382, 1.442695
        %v384 = vpow.pop %v383
        %385 = vadd.xlane.f32.xlu0 %v384
        %v386 = vpop.xlane.xlu0 %385
        %v387 = vlog2.pop %v386
        %v388 = vmul.f32 %v387, 0.6931472
        %v389 = vadd.f32 %v381, %v388
        %v390 = vld [vmem:[%s257] sm:$0xff]
        %391 = vset.pattern.permute.xlu0 0
        %392 = vperm.xlu0 %391, %v390
        %v393 = vpop.permute.xlu0 %392
        %vm394 = vcmp.eq.s32.totalorder %v377, %v393
        %v395 = vsel %vm394, %v379, 0.0
        %396 = vadd.xlane.f32.xlu0 %v395
        %v397 = vpop.xlane.xlu0 %396
        %v398 = vlaneseq
        %v399 = vshrl.u32 %v398, 7
        %vm400 = vcmp.lt.s32.totalorder %v399, 0
        %v401 = vsub.s32 0, %v399
        %v402 = vsel %vm400, %v401, %v399
        %v403 = vshrl.u32 %v402, 3
        %v404 = vand.u32 %v402, 7
        %v405 = vsub.s32 0, %v404
        %v406 = vsel %vm400, %v405, %v404
        %vm407 = vcmp.ne.s32.totalorder %v406, 0
        %vm408 = vcmp.lt.s32.totalorder %v406, 0
        %vm409 = vmand %vm408, %vm407
        %v410 = vadd.s32 %v406, 8
        %v411 = vsel %vm409, %v410, %v406
        %vm412 = vcmp.ne.s32.totalorder %v411, 7
        %v413 = vsub.f32 %v389, %v397
        %v414 = vsel %vm412, %v413, 0.0
        %v415 = vrot.slane %v414, 4
        %v416 = vadd.f32 %v414, %v415
        %v417 = vrot.slane %v416, 2
        %v418 = vadd.f32 %v416, %v417
        %v419 = vrot.slane %v418, 1
        %v420 = vadd.f32 %v418, %v419
        %vm421 = vcmask 0
        %422 = vst.msk [vmem:[%s260] sm:$0x1] %vm421, %v420
        %s423 = sand.u32 %s123, 1
        %s424 = scalar_lea.sflag [#allocation4], %s423
        %s425 = sand.u32 %s123, 1
        %s426 = smul.addr %s425, 4
        %s427 = scalar_lea.vmem [#allocation5], %s426
        %p428 = scmp.lt.s32.totalorder %s21, 1
        %s429 = scalar_select %p428, %s21, 1
        %s430 = scalar_lea.vmem %s5, %s429
        // Predicated region
        $region41: #{tpu_custom_call.1} parent=35 // pred_check
          %p431 = pneg %p133
        $region42: #{tpu_custom_call.1} parent=35 // pred_check_branch
          %433 = sbr.rel (%p431) target = $region44
        $region43: #{tpu_custom_call.1} parent=35 // pred_region
          %s435 = ssub.s32 64, 64
          %436 = vsyncadd %s424, %s435
          %s437 = smul.addr %s21, 64
          %s438 = scalar_lea.hbm %s4, %s437
          %s440 = sshll.u32 %s427, 4
          %s441 = int_to_ptr.vmem [resolvable:$true] %s440
          %443 = dma.vmem_to_hbm [thread:$0]  %s441, 64, %s438, %s424
        $region44: #{tpu_custom_call.1} parent=35 // pred_fallthru
          _
        // Predicated region
        $region45: #{tpu_custom_call.1} parent=35 // pred_check
          %p444 = pneg %p159
        $region46: #{tpu_custom_call.1} parent=35 // pred_check_branch
          %446 = sbr.rel (%p444) target = $region48
        $region47: #{tpu_custom_call.1} parent=35 // pred_region
          _
        $region48: #{tpu_custom_call.1} parent=35 // pred_fallthru
          _
      $region36: #{tpu_custom_call.1} parent=5 // pred_fallthru
        _
      %p447 = scmp.le.s32.totalorder 2, %s16
      // Predicated region
      $region49: #{tpu_custom_call.1} parent=5 // pred_check
        %p448 = pneg %p447
      $region50: #{tpu_custom_call.1} parent=5 // pred_check_branch
        %450 = sbr.rel (%p448) target = $region52
      $region51: #{tpu_custom_call.1} parent=5 // pred_region
        %s451 = ssub.s32 %s16, 2
        // Predicated region
        $region53: #{tpu_custom_call.1} parent=51 // pred_check
          %p452 = pneg %p139
        $region54: #{tpu_custom_call.1} parent=51 // pred_check_branch
          %454 = sbr.rel (%p452) target = $region56
        $region55: #{tpu_custom_call.1} parent=51 // pred_region
          %s455 = sand.u32 %s124, 1
          %s456 = scalar_lea.sflag [#allocation4], %s455
          %s457 = sand.u32 %s124, 1
          %s458 = smul.addr %s457, 4
          %s459 = scalar_lea.vmem [#allocation5], %s458
          %460 = dma.done %s456, 64
        $region56: #{tpu_custom_call.1} parent=51 // pred_fallthru
          _
        // Predicated region
        $region57: #{tpu_custom_call.1} parent=51 // pred_check
          %p461 = pneg %p165
        $region58: #{tpu_custom_call.1} parent=51 // pred_check_branch
          %463 = sbr.rel (%p461) target = $region60
        $region59: #{tpu_custom_call.1} parent=51 // pred_region
          %p464 = scmp.lt.s32.totalorder %s22, 1
          %s465 = scalar_select %p464, %s22, 1
          %s466 = scalar_lea.vmem %s5, %s465
        $region60: #{tpu_custom_call.1} parent=51 // pred_fallthru
          _
      $region52: #{tpu_custom_call.1} parent=5 // pred_fallthru
        _
    $region6: #{tpu_custom_call.1} parent=1 // loop_footer
      %s20 = sadd.s32 1, %s16
    $region7: #{tpu_custom_call.1} parent=1 // loop_footer_branch
      %15 = sbr.rel target = $region3
    $region8: #{tpu_custom_call.1} parent=1 // loop_exit
      _
    %467 = vsyncpa [#allocation3], 1
    %s468 = scalar_lea.sflag [#allocation3], 1
    %469 = vsyncpa %s468, 1
    %470 = vsyncpa [#allocation4], 1
    %s471 = scalar_lea.sflag [#allocation4], 1
    %472 = vsyncpa %s471, 1

</llo_original>
